<compile_context>
chip_gen: v7x
topology: tpu7x:2x2x1
jax: 0.10.0
libtpu: 0.0.40
codegen_flags: <defaults>
</compile_context>

<pallas_src>
import functools

import jax
import jax.numpy as jnp
from jax.experimental import pallas as pl
from jax.experimental.pallas import tpu as pltpu


def _round_up(x, m):
    return ((x + m - 1) // m) * m


def _sigmoid_via_tanh(x):
    # sigmoid(x) == 0.5 * (tanh(0.5 x) + 1); single EUP op instead of exp+recip.
    return 0.5 * (jnp.tanh(0.5 * x) + 1.0)


def _lstm_cell_kernel(xh_ref, w_ref, b_ref, cx_ref, hy_ref, cy_ref, *, tn):
    """One hidden-tile of an LSTM cell step.

    xh_ref : [Bp, Kp]       bf16   (concat of x and h, zero-padded)
    w_ref  : [Kp, 4*TN]     bf16   (i/f/g/o columns for this hidden tile)
    b_ref  : [1, 4*TN]      f32
    cx_ref : [Bp, TN]       f32/out-dtype
    hy_ref, cy_ref : [Bp, TN]
    """
    # Single fused MXU dot, f32 accumulation.
    gates = jnp.dot(xh_ref[...], w_ref[...], preferred_element_type=jnp.float32)
    gates = gates + b_ref[...]                       # broadcast over batch rows

    ingate     = _sigmoid_via_tanh(gates[:, 0 * tn:1 * tn])
    forgetgate = _sigmoid_via_tanh(gates[:, 1 * tn:2 * tn])
    cellgate   = jnp.tanh(gates[:, 2 * tn:3 * tn])
    outgate    = _sigmoid_via_tanh(gates[:, 3 * tn:4 * tn])

    cx = cx_ref[...].astype(jnp.float32)
    cy = forgetgate * cx + ingate * cellgate
    hy = outgate * jnp.tanh(cy)

    cy_ref[...] = cy.astype(cy_ref.dtype)
    hy_ref[...] = hy.astype(hy_ref.dtype)


def prepare_lstm_params(weight_ih, weight_hh, bias_ih, bias_hh, *, tn=128):
    """One-time parameter packing (do NOT call per step).

    Returns:
      w_packed : [Kp, 4*Hp]  bf16 — rows = [x features | h features | zero pad],
                 columns laid out as [n_tiles, (i,f,g,o), TN] flattened.
      b_packed : [1, 4*Hp]   f32  — bias_ih + bias_hh in the same column order.
    """
    four_h, input_size = weight_ih.shape
    hidden = four_h // 4
    assert weight_hh.shape == (four_h, hidden)

    k = input_size + hidden
    kp = _round_up(k, 128)
    hp = _round_up(hidden, tn)
    n_tiles = hp // tn

    # [4H, K] -> [K, 4H] -> [K, 4, H] -> pad -> [Kp, 4, Hp]
    w = jnp.concatenate([weight_ih, weight_hh], axis=1).T.reshape(k, 4, hidden)
    w = jnp.pad(w, ((0, kp - k), (0, 0), (0, hp - hidden)))
    # reorder columns so each hidden tile holds its own (i, f, g, o) slices
    w = (w.reshape(kp, 4, n_tiles, tn)
           .transpose(0, 2, 1, 3)
           .reshape(kp, n_tiles * 4 * tn))
    w_packed = w.astype(jnp.bfloat16)

    b = (bias_ih + bias_hh).reshape(4, hidden)
    b = jnp.pad(b, ((0, 0), (0, hp - hidden)))
    b = (b.reshape(4, n_tiles, tn)
           .transpose(1, 0, 2)
           .reshape(1, n_tiles * 4 * tn)).astype(jnp.float32)
    return w_packed, b


def lstm_cell_forward(x, hx, cx, w_packed, b_packed, *, hidden, tn=128):
    """Matches torch LSTMCell.forward (eval mode): returns (hy, (hy, cy))."""
    B, input_size = x.shape
    k = input_size + hidden
    kp = w_packed.shape[0]
    hp = _round_up(hidden, tn)
    n_tiles = hp // tn
    bp = _round_up(max(B, 1), 16)          # bf16 sublane-friendly batch padding
    out_dtype = x.dtype

    # Fused matmul operand: [x | h], zero-padded to [Bp, Kp], bf16 for the MXU.
    xh = jnp.concatenate([x, hx], axis=1)
    xh = jnp.pad(xh, ((0, bp - B), (0, kp - k))).astype(jnp.bfloat16)
    cx_p = jnp.pad(cx, ((0, bp - B), (0, hp - hidden))).astype(out_dtype)

    out_shape = (
        jax.ShapeDtypeStruct((bp, hp), out_dtype),   # hy
        jax.ShapeDtypeStruct((bp, hp), out_dtype),   # cy
    )

    hy_p, cy_p = pl.pallas_call(
        functools.partial(_lstm_cell_kernel, tn=tn),
        out_shape=out_shape,
        grid=(n_tiles,),
        in_specs=[
            pl.BlockSpec((bp, kp), lambda j: (0, 0)),       # xh (full, reused)
            pl.BlockSpec((kp, 4 * tn), lambda j: (0, j)),   # weight tile
            pl.BlockSpec((1, 4 * tn), lambda j: (0, j)),    # bias tile
            pl.BlockSpec((bp, tn), lambda j: (0, j)),       # cx tile
        ],
        out_specs=(
            pl.BlockSpec((bp, tn), lambda j: (0, j)),       # hy tile
            pl.BlockSpec((bp, tn), lambda j: (0, j)),       # cy tile
        ),
        input_output_aliases={3: 1},                        # cx -> cy in place
        compiler_params=pltpu.CompilerParams(
            dimension_semantics=("parallel",)),
    )(xh, w_packed, b_packed, cx_p)

    hy = hy_p[:B, :hidden]
    cy = cy_p[:B, :hidden]
    return hy, (hy, cy)


def _reference_lstm_cell(x, hx, cx, weight_ih, weight_hh, bias_ih, bias_hh):
    """Pure-JAX f32 reference (eval-mode torch semantics)."""
    gates = x @ weight_ih.T + bias_ih + hx @ weight_hh.T + bias_hh
    H = hx.shape[1]
    i, f, g, o = (gates[:, 0:H], gates[:, H:2 * H],
                  gates[:, 2 * H:3 * H], gates[:, 3 * H:4 * H])
    i, f, g, o = jax.nn.sigmoid(i), jax.nn.sigmoid(f), jnp.tanh(g), jax.nn.sigmoid(o)
    cy = f * cx + i * g
    hy = o * jnp.tanh(cy)
    return hy, cy


def _init_params(key, input_size, hidden):
    """Deterministic init mimicking LSTMCell.reset_parameters."""
    k_ih, k_hh = jax.random.split(key)
    weight_ih = 0.3 * jax.random.truncated_normal(
        k_ih, -2.0, 2.0, (4 * hidden, input_size), dtype=jnp.float32)
    a = jax.random.normal(k_hh, (4 * hidden, hidden), dtype=jnp.float32)
    q, r = jnp.linalg.qr(a)
    q = q * jnp.sign(jnp.diagonal(r))[None, :]
    weight_hh = q.astype(jnp.float32)
    bias_ih = jnp.zeros((4 * hidden,), jnp.float32)
    bias_hh = jnp.zeros((4 * hidden,), jnp.float32)
    return weight_ih, weight_hh, bias_ih, bias_hh


if __name__ == "__main__":
    B, INPUT_SIZE, HIDDEN = 2, 16, 32
    TN = 128

    key = jax.random.PRNGKey(0)
    k_x, k_h, k_c, k_w = jax.random.split(key, 4)
    x = jax.random.normal(k_x, (B, INPUT_SIZE), dtype=jnp.float32)
    hx = jax.random.normal(k_h, (B, HIDDEN), dtype=jnp.float32)
    cx = jax.random.normal(k_c, (B, HIDDEN), dtype=jnp.float32)
    weight_ih, weight_hh, bias_ih, bias_hh = _init_params(k_w, INPUT_SIZE, HIDDEN)

    # One-time packing (per-parameter-set, NOT per step).
    w_packed, b_packed = prepare_lstm_params(
        weight_ih, weight_hh, bias_ih, bias_hh, tn=TN)

    fwd = jax.jit(functools.partial(lstm_cell_forward, hidden=HIDDEN, tn=TN))
    hy, (hy2, cy) = jax.block_until_ready(fwd(x, hx, cx, w_packed, b_packed))

    hy_ref, cy_ref = _reference_lstm_cell(
        x, hx, cx, weight_ih, weight_hh, bias_ih, bias_hh)

    # bf16 MXU operands -> loosened (but still tight) tolerances vs f32 ref.
    assert jnp.allclose(hy, hy_ref, atol=3e-2, rtol=3e-2), (
        float(jnp.max(jnp.abs(hy - hy_ref))))
    assert jnp.allclose(cy, cy_ref, atol=3e-2, rtol=3e-2), (
        float(jnp.max(jnp.abs(cy - cy_ref))))
    assert hy.shape == (B, HIDDEN) and cy.shape == (B, HIDDEN)
    assert jnp.array_equal(hy, hy2)

    print("KERNEL_OK")
</pallas_src>

<mosaic_0001>
module attributes {stable_mosaic.version = 11 : i64} {
  func.func @_lstm_cell_kernel(%arg0: i32, %arg1: memref<16x128xbf16, #tpu.memory_space<vmem>>, %arg2: memref<128x512xbf16, #tpu.memory_space<vmem>>, %arg3: memref<1x512xf32, #tpu.memory_space<vmem>>, %arg4: memref<16x128xf32, #tpu.memory_space<vmem>>, %arg5: memref<16x128xf32, #tpu.memory_space<vmem>>, %arg6: memref<16x128xf32, #tpu.memory_space<vmem>>) attributes {dimension_semantics = [#tpu.dimension_semantics<parallel>], iteration_bounds = array<i64: 1>, scalar_prefetch = 0 : i64, scratch_operands = 0 : i64, tpu.core_type = #tpu.core_type<tc>, window_params = [{pipeline_mode = #tpu.pipeline_mode<synchronous>, transform_indices = @transform_0, window_bounds = array<i64: 16, 128>}, {transform_indices = @transform_1, window_bounds = array<i64: 128, 512>}, {transform_indices = @transform_2, window_bounds = array<i64: 1, 512>}, {transform_indices = @transform_3, window_bounds = array<i64: 16, 128>}, {transform_indices = @transform_4, window_bounds = array<i64: 16, 128>}, {transform_indices = @transform_5, window_bounds = array<i64: 16, 128>}]} {
    %c0 = arith.constant 0 : index
    %c0_0 = arith.constant 0 : index
    %0 = vector.load %arg1[%c0, %c0_0] : memref<16x128xbf16, #tpu.memory_space<vmem>>, vector<16x128xbf16>
    %c0_1 = arith.constant 0 : index
    %c0_2 = arith.constant 0 : index
    %1 = vector.load %arg2[%c0_1, %c0_2] : memref<128x512xbf16, #tpu.memory_space<vmem>>, vector<128x512xbf16>
    %cst = arith.constant dense<0.000000e+00> : vector<16x512xf32>
    %2 = tpu.matmul %0, %1, %cst {dimension_numbers = #tpu.dot_dimension_numbers<[1], [0], [0], [1], [0, 0, 1, 1], [], []>} : vector<16x128xbf16>, vector<128x512xbf16>, vector<16x512xf32> -> vector<16x512xf32>
    %c0_3 = arith.constant 0 : index
    %c0_4 = arith.constant 0 : index
    %3 = vector.load %arg3[%c0_3, %c0_4] : memref<1x512xf32, #tpu.memory_space<vmem>>, vector<1x512xf32>
    %4 = vector.broadcast %3 : vector<1x512xf32> to vector<16x512xf32>
    %5 = arith.addf %2, %4 : vector<16x512xf32>
    %6 = vector.extract_strided_slice %5 {offsets = [0, 0], sizes = [16, 128], strides = [1, 1]} : vector<16x512xf32> to vector<16x128xf32>
    %cst_5 = arith.constant 5.000000e-01 : f32
    %7 = vector.broadcast %cst_5 : f32 to vector<16x128xf32>
    %8 = arith.mulf %7, %6 : vector<16x128xf32>
    %9 = math.tanh %8 : vector<16x128xf32>
    %cst_6 = arith.constant 1.000000e+00 : f32
    %10 = vector.broadcast %cst_6 : f32 to vector<16x128xf32>
    %11 = arith.addf %9, %10 : vector<16x128xf32>
    %cst_7 = arith.constant 5.000000e-01 : f32
    %12 = vector.broadcast %cst_7 : f32 to vector<16x128xf32>
    %13 = arith.mulf %12, %11 : vector<16x128xf32>
    %14 = vector.extract_strided_slice %5 {offsets = [0, 128], sizes = [16, 128], strides = [1, 1]} : vector<16x512xf32> to vector<16x128xf32>
    %cst_8 = arith.constant 5.000000e-01 : f32
    %15 = vector.broadcast %cst_8 : f32 to vector<16x128xf32>
    %16 = arith.mulf %15, %14 : vector<16x128xf32>
    %17 = math.tanh %16 : vector<16x128xf32>
    %cst_9 = arith.constant 1.000000e+00 : f32
    %18 = vector.broadcast %cst_9 : f32 to vector<16x128xf32>
    %19 = arith.addf %17, %18 : vector<16x128xf32>
    %cst_10 = arith.constant 5.000000e-01 : f32
    %20 = vector.broadcast %cst_10 : f32 to vector<16x128xf32>
    %21 = arith.mulf %20, %19 : vector<16x128xf32>
    %22 = vector.extract_strided_slice %5 {offsets = [0, 256], sizes = [16, 128], strides = [1, 1]} : vector<16x512xf32> to vector<16x128xf32>
    %23 = math.tanh %22 : vector<16x128xf32>
    %24 = vector.extract_strided_slice %5 {offsets = [0, 384], sizes = [16, 128], strides = [1, 1]} : vector<16x512xf32> to vector<16x128xf32>
    %cst_11 = arith.constant 5.000000e-01 : f32
    %25 = vector.broadcast %cst_11 : f32 to vector<16x128xf32>
    %26 = arith.mulf %25, %24 : vector<16x128xf32>
    %27 = math.tanh %26 : vector<16x128xf32>
    %cst_12 = arith.constant 1.000000e+00 : f32
    %28 = vector.broadcast %cst_12 : f32 to vector<16x128xf32>
    %29 = arith.addf %27, %28 : vector<16x128xf32>
    %cst_13 = arith.constant 5.000000e-01 : f32
    %30 = vector.broadcast %cst_13 : f32 to vector<16x128xf32>
    %31 = arith.mulf %30, %29 : vector<16x128xf32>
    %c0_14 = arith.constant 0 : index
    %c0_15 = arith.constant 0 : index
    %32 = vector.load %arg4[%c0_14, %c0_15] : memref<16x128xf32, #tpu.memory_space<vmem>>, vector<16x128xf32>
    %33 = arith.mulf %21, %32 : vector<16x128xf32>
    %34 = arith.mulf %13, %23 : vector<16x128xf32>
    %35 = arith.addf %33, %34 : vector<16x128xf32>
    %36 = math.tanh %35 : vector<16x128xf32>
    %37 = arith.mulf %31, %36 : vector<16x128xf32>
    %c0_16 = arith.constant 0 : index
    %c0_17 = arith.constant 0 : index
    %38 = vector.load %arg6[%c0_16, %c0_17] : memref<16x128xf32, #tpu.memory_space<vmem>>, vector<16x128xf32>
    tpu.vector_store %arg6[%c0_16, %c0_17], %35 {strides = array<i32>} : memref<16x128xf32, #tpu.memory_space<vmem>>, vector<16x128xf32>,
    %c0_18 = arith.constant 0 : index
    %c0_19 = arith.constant 0 : index
    %39 = vector.load %arg5[%c0_18, %c0_19] : memref<16x128xf32, #tpu.memory_space<vmem>>, vector<16x128xf32>
    tpu.vector_store %arg5[%c0_18, %c0_19], %37 {strides = array<i32>} : memref<16x128xf32, #tpu.memory_space<vmem>>, vector<16x128xf32>,
    return
  }
  func.func @transform_0(%arg0: i32) -> (i32, i32) {
    %c0_i32 = arith.constant 0 : i32
    %c0_i32_0 = arith.constant 0 : i32
    %c0_i32_1 = arith.constant 0 : i32
    return %c0_i32, %c0_i32_0 : i32, i32
  }
  func.func @transform_1(%arg0: i32) -> (i32, i32) {
    %c0_i32 = arith.constant 0 : i32
    %c0_i32_0 = arith.constant 0 : i32
    return %c0_i32, %arg0 : i32, i32
  }
  func.func @transform_2(%arg0: i32) -> (i32, i32) {
    %c0_i32 = arith.constant 0 : i32
    %c0_i32_0 = arith.constant 0 : i32
    return %c0_i32, %arg0 : i32, i32
  }
  func.func @transform_3(%arg0: i32) -> (i32, i32) {
    %c0_i32 = arith.constant 0 : i32
    %c0_i32_0 = arith.constant 0 : i32
    return %c0_i32, %arg0 : i32, i32
  }
  func.func @transform_4(%arg0: i32) -> (i32, i32) {
    %c0_i32 = arith.constant 0 : i32
    %c0_i32_0 = arith.constant 0 : i32
    return %c0_i32, %arg0 : i32, i32
  }
  func.func @transform_5(%arg0: i32) -> (i32, i32) {
    %c0_i32 = arith.constant 0 : i32
    %c0_i32_0 = arith.constant 0 : i32
    return %c0_i32, %arg0 : i32, i32
  }
}

</mosaic_0001>

<llo_original>
// kernel: lstm_cell_forward.1
$region0: #{lstm_cell_forward.1}
  #allocation0 [shape = 'u32[]', space=smem, size = 0x4, offset = 0x4, fixed_abs, tag = 'smem constant byte address 0x4 - core index']
  #allocation1 [shape = 'u32[144,128]{1,0:T(1,128)}', space=vmem, size = 0x12000, scoped, tag = 'internal scratch']
  %s0 = inlined_call_operand.vmem [shape: bf16[16,128], index: 0, kind: input, shape index: {}]
  %s1 = inlined_call_operand.hbm [shape: bf16[128,512], index: 1, kind: input, shape index: {}]
  %s2 = inlined_call_operand.vmem [shape: f32[1,512], index: 2, kind: input, shape index: {}]
  %s3 = inlined_call_operand.vmem [shape: f32[16,128], index: 3, kind: input, shape index: {}, may-alias: {3,5}]
  %s4 = inlined_call_operand.vmem [shape: f32[16,128], index: 4, kind: output, shape index: {0}]
  %s5 = inlined_call_operand.vmem [shape: f32[16,128], index: 5, kind: output, shape index: {1}, may-alias: {3,5}]
  %6 = xla_tuple %s4, %s5
  %s7 = sld [smem:[#allocation0]]
  $region38: #{lstm_cell_forward.1} parent=0
    _
  %s9 = ssub.s32 1, %s7
  %s10 = scalar_select 0, %s9, %s7
  $region1: #{lstm_cell_forward.1} parent=0
    #allocation2 [shape = 'u8[131072]{0}', space=vmem, size = 0x20000, scoped, tag = 'input window, operand 1, single buffered']
    #allocation3 [shape = 's32[1]{0}', space=sflag, size = 0x4, scoped, tag = 'scoped memory for lstm_cell_forward.1']
    %11 = vsyncpa [#allocation3], 0
    // Predicated region
    $region2: #{lstm_cell_forward.1} parent=1 // pred_check
      _
    $region3: #{lstm_cell_forward.1} parent=1 // pred_check_branch
      %13 = sbr.rel (0) target = $region5
    $region4: #{lstm_cell_forward.1} parent=1 // pred_region
      _
    $region5: #{lstm_cell_forward.1} parent=1 // pred_fallthru
      _
    // Predicated region
    $region6: #{lstm_cell_forward.1} parent=1 // pred_check
      _
    $region7: #{lstm_cell_forward.1} parent=1 // pred_check_branch
      %15 = sbr.rel (0) target = $region9
    $region8: #{lstm_cell_forward.1} parent=1 // pred_region
      %s17 = ssub.s32 4096, 4096
      %18 = vsyncadd [#allocation3], %s17
      %s19 = sshll.u32 [#allocation2], 4
      %s20 = int_to_ptr.vmem [resolvable:$true] %s19
      %25 = dma.hbm_to_vmem [thread:$0]  %s1, 4096, %s20, [#allocation3], 256, 256, 16
    $region9: #{lstm_cell_forward.1} parent=1 // pred_fallthru
      _
    // Predicated region
    $region10: #{lstm_cell_forward.1} parent=1 // pred_check
      _
    $region11: #{lstm_cell_forward.1} parent=1 // pred_check_branch
      %27 = sbr.rel (0) target = $region13
    $region12: #{lstm_cell_forward.1} parent=1 // pred_region
      _
    $region13: #{lstm_cell_forward.1} parent=1 // pred_fallthru
      _
    // Predicated region
    $region14: #{lstm_cell_forward.1} parent=1 // pred_check
      _
    $region15: #{lstm_cell_forward.1} parent=1 // pred_check_branch
      %29 = sbr.rel (0) target = $region17
    $region16: #{lstm_cell_forward.1} parent=1 // pred_region
      _
    $region17: #{lstm_cell_forward.1} parent=1 // pred_fallthru
      _
    // Predicated region
    $region18: #{lstm_cell_forward.1} parent=1 // pred_check
      _
    $region19: #{lstm_cell_forward.1} parent=1 // pred_check_branch
      %31 = sbr.rel (0) target = $region21
    $region20: #{lstm_cell_forward.1} parent=1 // pred_region
      %32 = dma.done [#allocation3], 4096
    $region21: #{lstm_cell_forward.1} parent=1 // pred_fallthru
      _
    %v34 = vld [vmem:[%s0] sm:$0xf]
    %v35 = vld [vmem:[%s0 + $0x4] sm:$0xf]
    %v36 = vld [vmem:[#allocation2] sm:$0xff]
    %v37 = vld [vmem:[#allocation2 + $0x8] sm:$0xff]
    %v38 = vld [vmem:[#allocation2 + $0x10] sm:$0xff]
    %v39 = vld [vmem:[#allocation2 + $0x18] sm:$0xff]
    %v40 = vld [vmem:[#allocation2 + $0x20] sm:$0xff]
    %v41 = vld [vmem:[#allocation2 + $0x28] sm:$0xff]
    %v42 = vld [vmem:[#allocation2 + $0x30] sm:$0xff]
    %v43 = vld [vmem:[#allocation2 + $0x38] sm:$0xff]
    %v44 = vld [vmem:[#allocation2 + $0x40] sm:$0xff]
    %v45 = vld [vmem:[#allocation2 + $0x48] sm:$0xff]
    %v46 = vld [vmem:[#allocation2 + $0x50] sm:$0xff]
    %v47 = vld [vmem:[#allocation2 + $0x58] sm:$0xff]
    %v48 = vld [vmem:[#allocation2 + $0x60] sm:$0xff]
    %v49 = vld [vmem:[#allocation2 + $0x68] sm:$0xff]
    %v50 = vld [vmem:[#allocation2 + $0x70] sm:$0xff]
    %v51 = vld [vmem:[#allocation2 + $0x78] sm:$0xff]
    %v52 = vld [vmem:[#allocation2 + $0x80] sm:$0xff]
    %v53 = vld [vmem:[#allocation2 + $0x88] sm:$0xff]
    %v54 = vld [vmem:[#allocation2 + $0x90] sm:$0xff]
    %v55 = vld [vmem:[#allocation2 + $0x98] sm:$0xff]
    %v56 = vld [vmem:[#allocation2 + $0xa0] sm:$0xff]
    %v57 = vld [vmem:[#allocation2 + $0xa8] sm:$0xff]
    %v58 = vld [vmem:[#allocation2 + $0xb0] sm:$0xff]
    %v59 = vld [vmem:[#allocation2 + $0xb8] sm:$0xff]
    %v60 = vld [vmem:[#allocation2 + $0xc0] sm:$0xff]
    %v61 = vld [vmem:[#allocation2 + $0xc8] sm:$0xff]
    %v62 = vld [vmem:[#allocation2 + $0xd0] sm:$0xff]
    %v63 = vld [vmem:[#allocation2 + $0xd8] sm:$0xff]
    %v64 = vld [vmem:[#allocation2 + $0xe0] sm:$0xff]
    %v65 = vld [vmem:[#allocation2 + $0xe8] sm:$0xff]
    %v66 = vld [vmem:[#allocation2 + $0xf0] sm:$0xff]
    %v67 = vld [vmem:[#allocation2 + $0xf8] sm:$0xff]
    %v68 = vld [vmem:[%s2] sm:$0xf]
    %v70 = vlaneseq
    %v71 = vshrl.u32 %v70, 7
    %v72 = vsub.s32 0, %v71
    %v73 = vrot.slane %v68, %v72
    %v74 = vlaneseq
    %v75 = vshrl.u32 %v74, 7
    %v76 = vsub.s32 1, %v75
    %v77 = vrot.slane %v68, %v76
    %v78 = vlaneseq
    %v79 = vshrl.u32 %v78, 7
    %v80 = vsub.s32 2, %v79
    %v81 = vrot.slane %v68, %v80
    %v82 = vlaneseq
    %v83 = vshrl.u32 %v82, 7
    %v84 = vsub.s32 3, %v83
    %v85 = vrot.slane %v68, %v84
    %v92 = vunpack.c.l.b16 %v34
    %v93 = vunpack.c.l.b16 %v35
    %v94 = vpack.c.b16 %v93, %v92
    %v128 = vunpack.c.l.b16 %v36
    %v129 = vunpack.c.h.b16 %v36
    %v130 = vunpack.c.l.b16 %v37
    %v131 = vunpack.c.h.b16 %v37
    %v132 = vunpack.c.l.b16 %v38
    %v133 = vunpack.c.h.b16 %v38
    %v134 = vunpack.c.l.b16 %v39
    %v135 = vunpack.c.h.b16 %v39
    %v136 = vunpack.c.l.b16 %v40
    %v137 = vunpack.c.h.b16 %v40
    %v138 = vunpack.c.l.b16 %v41
    %v139 = vunpack.c.h.b16 %v41
    %v140 = vunpack.c.l.b16 %v42
    %v141 = vunpack.c.h.b16 %v42
    %v142 = vunpack.c.l.b16 %v43
    %v143 = vunpack.c.h.b16 %v43
    %v144 = vunpack.c.l.b16 %v44
    %v145 = vunpack.c.h.b16 %v44
    %v146 = vunpack.c.l.b16 %v45
    %v147 = vunpack.c.h.b16 %v45
    %v148 = vunpack.c.l.b16 %v46
    %v149 = vunpack.c.h.b16 %v46
    %v150 = vunpack.c.l.b16 %v47
    %v151 = vunpack.c.h.b16 %v47
    %v152 = vunpack.c.l.b16 %v48
    %v153 = vunpack.c.h.b16 %v48
    %v154 = vunpack.c.l.b16 %v49
    %v155 = vunpack.c.h.b16 %v49
    %v156 = vunpack.c.l.b16 %v50
    %v157 = vunpack.c.h.b16 %v50
    %v158 = vunpack.c.l.b16 %v51
    %v159 = vunpack.c.h.b16 %v51
    %v160 = vunpack.c.l.b16 %v52
    %v161 = vunpack.c.h.b16 %v52
    %v162 = vunpack.c.l.b16 %v53
    %v163 = vunpack.c.h.b16 %v53
    %v164 = vunpack.c.l.b16 %v54
    %v165 = vunpack.c.h.b16 %v54
    %v166 = vunpack.c.l.b16 %v55
    %v167 = vunpack.c.h.b16 %v55
    %v168 = vunpack.c.l.b16 %v56
    %v169 = vunpack.c.h.b16 %v56
    %v170 = vunpack.c.l.b16 %v57
    %v171 = vunpack.c.h.b16 %v57
    %v172 = vunpack.c.l.b16 %v58
    %v173 = vunpack.c.h.b16 %v58
    %v174 = vunpack.c.l.b16 %v59
    %v175 = vunpack.c.h.b16 %v59
    %v176 = vunpack.c.l.b16 %v60
    %v177 = vunpack.c.h.b16 %v60
    %v178 = vunpack.c.l.b16 %v61
    %v179 = vunpack.c.h.b16 %v61
    %v180 = vunpack.c.l.b16 %v62
    %v181 = vunpack.c.h.b16 %v62
    %v182 = vunpack.c.l.b16 %v63
    %v183 = vunpack.c.h.b16 %v63
    %v184 = vunpack.c.l.b16 %v64
    %v185 = vunpack.c.h.b16 %v64
    %v186 = vunpack.c.l.b16 %v65
    %v187 = vunpack.c.h.b16 %v65
    %v188 = vunpack.c.l.b16 %v66
    %v189 = vunpack.c.h.b16 %v66
    %v190 = vunpack.c.l.b16 %v67
    %v191 = vunpack.c.h.b16 %v67
    %v192 = vpack.c.b16 %v132, %v128
    %v193 = vpack.c.b16 %v133, %v129
    %v194 = vpack.c.b16 %v134, %v130
    %v195 = vpack.c.b16 %v135, %v131
    %v196 = vpack.c.b16 %v140, %v136
    %v197 = vpack.c.b16 %v141, %v137
    %v198 = vpack.c.b16 %v142, %v138
    %v199 = vpack.c.b16 %v143, %v139
    %v200 = vpack.c.b16 %v148, %v144
    %v201 = vpack.c.b16 %v149, %v145
    %v202 = vpack.c.b16 %v150, %v146
    %v203 = vpack.c.b16 %v151, %v147
    %v204 = vpack.c.b16 %v156, %v152
    %v205 = vpack.c.b16 %v157, %v153
    %v206 = vpack.c.b16 %v158, %v154
    %v207 = vpack.c.b16 %v159, %v155
    %v208 = vpack.c.b16 %v164, %v160
    %v209 = vpack.c.b16 %v165, %v161
    %v210 = vpack.c.b16 %v166, %v162
    %v211 = vpack.c.b16 %v167, %v163
    %v212 = vpack.c.b16 %v172, %v168
    %v213 = vpack.c.b16 %v173, %v169
    %v214 = vpack.c.b16 %v174, %v170
    %v215 = vpack.c.b16 %v175, %v171
    %v216 = vpack.c.b16 %v180, %v176
    %v217 = vpack.c.b16 %v181, %v177
    %v218 = vpack.c.b16 %v182, %v178
    %v219 = vpack.c.b16 %v183, %v179
    %v220 = vpack.c.b16 %v188, %v184
    %v221 = vpack.c.b16 %v189, %v185
    %v222 = vpack.c.b16 %v190, %v186
    %v223 = vpack.c.b16 %v191, %v187
    %256 = vmatprep.subr.bf16.mxu0 %v193
    %257 = vmatpush1.bf16.msra.mxu0 %v192
    %258 = vmatprep.subr.bf16.mxu0 %v197
    %259 = vmatpush1.bf16.msra.mxu0 %v196
    %260 = vmatprep.subr.bf16.mxu0 %v201
    %261 = vmatpush1.bf16.msra.mxu0 %v200
    %262 = vmatprep.subr.bf16.mxu0 %v205
    %263 = vmatpush1.bf16.msra.mxu0 %v204
    %264 = vmatprep.subr.bf16.mxu0 %v209
    %265 = vmatpush1.bf16.msra.mxu0 %v208
    %266 = vmatprep.subr.bf16.mxu0 %v213
    %267 = vmatpush1.bf16.msra.mxu0 %v212
    %268 = vmatprep.subr.bf16.mxu0 %v217
    %269 = vmatpush1.bf16.msra.mxu0 %v216
    %270 = vmatprep.subr.bf16.mxu0 %v221
    %271 = vmatpush1.bf16.msra.mxu0 %v220
    %272 = vmatprep.subr.bf16.mxu0 0
    %273 = vmatpush1.bf16.msra.mxu0 0
    %274 = vmatprep.subr.bf16.mxu0 0
    %275 = vmatpush1.bf16.msra.mxu0 0
    %276 = vmatprep.subr.bf16.mxu0 0
    %277 = vmatpush1.bf16.msra.mxu0 0
    %278 = vmatprep.subr.bf16.mxu0 0
    %279 = vmatpush1.bf16.msra.mxu0 0
    %280 = vmatprep.subr.bf16.mxu0 0
    %281 = vmatpush1.bf16.msra.mxu0 0
    %282 = vmatprep.subr.bf16.mxu0 0
    %283 = vmatpush1.bf16.msra.mxu0 0
    %284 = vmatprep.subr.bf16.mxu0 0
    %285 = vmatpush1.bf16.msra.mxu0 0
    %286 = vmatprep.subr.bf16.mxu0 0
    %287 = vmatpush1.bf16.msra.mxu0 0
    %288 = vmatprep.mubr.bf16.mxu0 0
    %289 = vmatmul.mubr.bf16.gmra.mrb[0].mxu0 %v94
    %v290 = vpop.f32.mrb[0].mxu0
    %v291 = vadd.f32 %v73, %v290
    %v292 = vpop.f32.mrb[0].mxu0
    %v293 = vadd.f32 %v77, %v292
    %v294 = vpop.f32.mrb[0].mxu0
    %v295 = vadd.f32 %v73, %v294
    %v296 = vpop.f32.mrb[0].mxu0
    %v297 = vadd.f32 %v77, %v296
    %298 = vdwg.mxu0
    %299 = vmatprep.subr.bf16.mxu0 %v195
    %300 = vmatpush1.bf16.msra.mxu0 %v194
    %301 = vmatprep.subr.bf16.mxu0 %v199
    %302 = vmatpush1.bf16.msra.mxu0 %v198
    %303 = vmatprep.subr.bf16.mxu0 %v203
    %304 = vmatpush1.bf16.msra.mxu0 %v202
    %305 = vmatprep.subr.bf16.mxu0 %v207
    %306 = vmatpush1.bf16.msra.mxu0 %v206
    %307 = vmatprep.subr.bf16.mxu0 %v211
    %308 = vmatpush1.bf16.msra.mxu0 %v210
    %309 = vmatprep.subr.bf16.mxu0 %v215
    %310 = vmatpush1.bf16.msra.mxu0 %v214
    %311 = vmatprep.subr.bf16.mxu0 %v219
    %312 = vmatpush1.bf16.msra.mxu0 %v218
    %313 = vmatprep.subr.bf16.mxu0 %v223
    %314 = vmatpush1.bf16.msra.mxu0 %v222
    %315 = vmatprep.subr.bf16.mxu0 0
    %316 = vmatpush1.bf16.msra.mxu0 0
    %317 = vmatprep.subr.bf16.mxu0 0
    %318 = vmatpush1.bf16.msra.mxu0 0
    %319 = vmatprep.subr.bf16.mxu0 0
    %320 = vmatpush1.bf16.msra.mxu0 0
    %321 = vmatprep.subr.bf16.mxu0 0
    %322 = vmatpush1.bf16.msra.mxu0 0
    %323 = vmatprep.subr.bf16.mxu0 0
    %324 = vmatpush1.bf16.msra.mxu0 0
    %325 = vmatprep.subr.bf16.mxu0 0
    %326 = vmatpush1.bf16.msra.mxu0 0
    %327 = vmatprep.subr.bf16.mxu0 0
    %328 = vmatpush1.bf16.msra.mxu0 0
    %329 = vmatprep.subr.bf16.mxu0 0
    %330 = vmatpush1.bf16.msra.mxu0 0
    %331 = vmatprep.mubr.bf16.mxu0 0
    %332 = vmatmul.mubr.bf16.gmra.mrb[0].mxu0 %v94
    %v333 = vpop.f32.mrb[0].mxu0
    %v334 = vadd.f32 %v81, %v333
    %v335 = vpop.f32.mrb[0].mxu0
    %v336 = vadd.f32 %v85, %v335
    %v337 = vpop.f32.mrb[0].mxu0
    %v338 = vadd.f32 %v81, %v337
    %v339 = vpop.f32.mrb[0].mxu0
    %v340 = vadd.f32 %v85, %v339
    %341 = vdwg.mxu0
    %v342 = vmul.f32 %v291, 0.5
    %v343 = vmul.f32 %v295, 0.5
    %v344 = vtanh.pop %v342
    %v345 = vtanh.pop %v343
    %v346 = vadd.f32 %v344, 1.0
    %v347 = vadd.f32 %v345, 1.0
    %v348 = vmul.f32 %v346, 0.5
    %v349 = vmul.f32 %v347, 0.5
    %v350 = vmul.f32 %v293, 0.5
    %v351 = vmul.f32 %v297, 0.5
    %v352 = vtanh.pop %v350
    %v353 = vtanh.pop %v351
    %v354 = vadd.f32 %v352, 1.0
    %v355 = vadd.f32 %v353, 1.0
    %v356 = vmul.f32 %v354, 0.5
    %v357 = vmul.f32 %v355, 0.5
    %v358 = vtanh.pop %v334
    %v359 = vtanh.pop %v338
    %v360 = vmul.f32 %v336, 0.5
    %v361 = vmul.f32 %v340, 0.5
    %v362 = vtanh.pop %v360
    %v363 = vtanh.pop %v361
    %v364 = vadd.f32 %v362, 1.0
    %v365 = vadd.f32 %v363, 1.0
    %v366 = vmul.f32 %v364, 0.5
    %v367 = vmul.f32 %v365, 0.5
    %v368 = vld [vmem:[%s3] sm:$0xff]
    %v369 = vld [vmem:[%s3 + $0x8] sm:$0xff]
    %v370 = vmul.f32 %v356, %v368
    %v371 = vmul.f32 %v357, %v369
    %v372 = vmul.f32 %v348, %v358
    %v373 = vmul.f32 %v349, %v359
    %v374 = vadd.f32 %v370, %v372
    %v375 = vadd.f32 %v371, %v373
    %v376 = vtanh.pop %v374
    %v377 = vtanh.pop %v375
    %v378 = vmul.f32 %v366, %v376
    %v379 = vmul.f32 %v367, %v377
    %380 = vst [vmem:[%s5] sm:$0xff] %v374
    %381 = vst [vmem:[%s5 + $0x8] sm:$0xff] %v375
    %382 = vst [vmem:[%s4] sm:$0xff] %v378
    %383 = vst [vmem:[%s4 + $0x8] sm:$0xff] %v379
    // Predicated region
    $region22: #{lstm_cell_forward.1} parent=1 // pred_check
      _
    $region23: #{lstm_cell_forward.1} parent=1 // pred_check_branch
      %385 = sbr.rel (0) target = $region25
    $region24: #{lstm_cell_forward.1} parent=1 // pred_region
      _
    $region25: #{lstm_cell_forward.1} parent=1 // pred_fallthru
      _
    // Predicated region
    $region26: #{lstm_cell_forward.1} parent=1 // pred_check
      _
    $region27: #{lstm_cell_forward.1} parent=1 // pred_check_branch
      %387 = sbr.rel (0) target = $region29
    $region28: #{lstm_cell_forward.1} parent=1 // pred_region
      _
    $region29: #{lstm_cell_forward.1} parent=1 // pred_fallthru
      _
    // Predicated region
    $region30: #{lstm_cell_forward.1} parent=1 // pred_check
      _
    $region31: #{lstm_cell_forward.1} parent=1 // pred_check_branch
      %389 = sbr.rel (0) target = $region33
    $region32: #{lstm_cell_forward.1} parent=1 // pred_region
      _
    $region33: #{lstm_cell_forward.1} parent=1 // pred_fallthru
      _
    // Predicated region
    $region34: #{lstm_cell_forward.1} parent=1 // pred_check
      _
    $region35: #{lstm_cell_forward.1} parent=1 // pred_check_branch
      %391 = sbr.rel (0) target = $region37
    $region36: #{lstm_cell_forward.1} parent=1 // pred_region
      _
    $region37: #{lstm_cell_forward.1} parent=1 // pred_fallthru
      _
    %392 = vsyncpa [#allocation3], 1

</llo_original>
